<compile_context>
chip_gen: v7x
topology: tpu7x:2x2x1
jax: 0.10.0
libtpu: 0.0.40
codegen_flags: <defaults>
</compile_context>

<pallas_src>
import math

import jax
import jax.numpy as jnp
from jax.experimental import pallas as pl
from jax.experimental.pallas import tpu as pltpu


def _largest_divisor_at_most(n, cap):
    cap = max(1, min(n, cap))
    for d in range(cap, 0, -1):
        if n % d == 0:
            return d
    return 1


def make_attention(B, S, D, *,
                   block_b=None, block_kv=None,
                   min_batch_steps=2,
                   out_dtype=jnp.float32,
                   vmem_budget_bytes=32 * 1024 * 1024):
    """Builds attention(k2, v2, q, mask) matching the torch Model.forward."""
    scale = 1.0 / math.sqrt(D)

    # Lane-dense layout: zero-pad the head dim up to a multiple of 128 in the
    # wrapper. Exact, and it turns every masked 32-lane vld/vst.msk into a
    # full-width unmasked op.
    Dp = ((D + 127) // 128) * 128

    # bf16 MXU operands / approx reciprocal only when the matmuls are big
    # enough to be MXU/EUP bound; at small shapes f32 + exact divide matches
    # the f32 torch reference tightly at no measurable cost.
    use_bf16 = S >= 512
    mxu_dtype = jnp.bfloat16 if use_bf16 else jnp.float32

    # KV tile along the softmax axis: whole extent for short / non-128-aligned
    # sequences, 512-wide tiles otherwise.
    if block_kv is None:
        block_kv = S if (S % 128 != 0 or S <= 1024) else 512
    assert S % block_kv == 0
    num_kv = S // block_kv
    kv_len = block_kv if num_kv > 1 else S

    # Batch tile: largest block that fits the VMEM budget, but keep at least
    # `min_batch_steps` grid steps along the (parallel) batch axis when B
    # allows it, so v7x's two TensorCores both get work.
    if block_b is None:
        per_b = 2 * 4 * (2 * S + 2 * kv_len) * Dp        # q,out + k,v double-buffered f32
        per_b += 4 * S * kv_len                          # logits / probs headroom
        if num_kv > 1:
            per_b += 4 * S * (2 * Dp + 2)                # flash scratch (q_sc, acc, m, l)
        fixed = 2 * 4 * S * kv_len                       # mask (double-buffered)
        cap = max(1, int((vmem_budget_bytes - fixed) // per_b))
        if B >= min_batch_steps:
            cap = min(cap, B // min_batch_steps)
        block_b = _largest_divisor_at_most(B, cap)
    assert B % block_b == 0
    num_b = B // block_b

    # ---- kernels -----------------------------------------------------------

    def attn_kernel_fast(q_ref, k_ref, v_ref, mask_ref, o_ref):
        # Single KV block: plain softmax, everything lives in vregs -- no
        # scratch round-trips, no init/finalize pl.when, no rescale math.
        q = (q_ref[...] * scale).astype(mxu_dtype)             # (TB, S, Dp)
        k = k_ref[...].astype(mxu_dtype)                        # (TB, S, Dp)
        s = jnp.einsum("bqd,bkd->bqk", q, k,
                       preferred_element_type=jnp.float32)      # (TB, S, S) f32
        # NOTE: assumes a large-negative finite additive mask (the module's
        # -1e9); a -inf mask with a fully masked row would produce NaN.
        s = s + mask_ref[...]                                    # (1, S, S) bcast over TB
        m = jnp.max(s, axis=-1, keepdims=True)
        p = jnp.exp(s - m)
        l = jnp.sum(p, axis=-1, keepdims=True)
        out = jnp.einsum("bqk,bkd->bqd",
                         p.astype(mxu_dtype), v_ref[...].astype(mxu_dtype),
                         preferred_element_type=jnp.float32)     # (TB, S, Dp) f32
        if use_bf16:
            inv_l = pl.reciprocal(l, approx=True)                # EUP vrcp
        else:
            inv_l = 1.0 / l                                      # exact at small shapes
        o_ref[...] = (out * inv_l).astype(o_ref.dtype)

    def attn_kernel_flash(q_ref, k_ref, v_ref, mask_ref, o_ref,
                          q_sc, m_sc, l_sc, acc_sc):
        ki = pl.program_id(1)

        @pl.when(ki == 0)
        def _init():
            # q block is constant across ki: scale + cast once into scratch.
            q_sc[...] = (q_ref[...] * scale).astype(mxu_dtype)
            m_sc[...] = jnp.full_like(m_sc, -jnp.inf)
            l_sc[...] = jnp.zeros_like(l_sc)
            acc_sc[...] = jnp.zeros_like(acc_sc)

        s = jnp.einsum("bqd,bkd->bqk", q_sc[...],
                       k_ref[...].astype(mxu_dtype),
                       preferred_element_type=jnp.float32)       # (TB, S, TK) f32
        s = s + mask_ref[...]

        # Online (flash) softmax, f32 math (required on v5e, correct everywhere).
        m_prev = m_sc[...]
        m_new = jnp.maximum(m_prev, jnp.max(s, axis=-1, keepdims=True))
        alpha = jnp.exp(m_prev - m_new)
        p = jnp.exp(s - m_new)
        l_sc[...] = alpha * l_sc[...] + jnp.sum(p, axis=-1, keepdims=True)
        pv = jnp.einsum("bqk,bkd->bqd",
                        p.astype(mxu_dtype), v_ref[...].astype(mxu_dtype),
                        preferred_element_type=jnp.float32)
        acc_sc[...] = alpha * acc_sc[...] + pv
        m_sc[...] = m_new

        @pl.when(ki == num_kv - 1)
        def _finalize():
            if use_bf16:
                inv_l = pl.reciprocal(l_sc[...], approx=True)
            else:
                inv_l = 1.0 / l_sc[...]
            o_ref[...] = (acc_sc[...] * inv_l).astype(o_ref.dtype)

    # ---- grid / specs ------------------------------------------------------

    if num_kv == 1:
        kernel = attn_kernel_fast
        grid_spec = pltpu.PrefetchScalarGridSpec(
            num_scalar_prefetch=0,
            grid=(num_b,),
            in_specs=[
                pl.BlockSpec((block_b, S, Dp), lambda bi: (bi, 0, 0)),   # q
                pl.BlockSpec((block_b, S, Dp), lambda bi: (bi, 0, 0)),   # k2
                pl.BlockSpec((block_b, S, Dp), lambda bi: (bi, 0, 0)),   # v2
                pl.BlockSpec((1, S, S), lambda bi: (0, 0, 0)),           # mask (bcast over batch)
            ],
            out_specs=pl.BlockSpec((block_b, S, Dp), lambda bi: (bi, 0, 0)),
        )
        dim_sem = ("parallel",)
    else:
        kernel = attn_kernel_flash
        grid_spec = pltpu.PrefetchScalarGridSpec(
            num_scalar_prefetch=0,
            grid=(num_b, num_kv),
            in_specs=[
                pl.BlockSpec((block_b, S, Dp), lambda bi, ki: (bi, 0, 0)),          # q
                pl.BlockSpec((block_b, block_kv, Dp), lambda bi, ki: (bi, ki, 0)),  # k2
                pl.BlockSpec((block_b, block_kv, Dp), lambda bi, ki: (bi, ki, 0)),  # v2
                pl.BlockSpec((1, S, block_kv), lambda bi, ki: (0, 0, ki)),          # mask
            ],
            out_specs=pl.BlockSpec((block_b, S, Dp), lambda bi, ki: (bi, 0, 0)),
            scratch_shapes=[
                pltpu.VMEM((block_b, S, Dp), mxu_dtype),     # hoisted scaled q
                pltpu.VMEM((block_b, S, 1), jnp.float32),    # running row max m
                pltpu.VMEM((block_b, S, 1), jnp.float32),    # running denom l
                pltpu.VMEM((block_b, S, Dp), jnp.float32),   # f32 output accumulator
            ],
        )
        dim_sem = ("parallel", "arbitrary")

    # Explicit VMEM budget derived from the chosen tiles; clamped so the same
    # builder stays safe under v7x's 64 MiB physical VMEM.
    est = 2 * 4 * block_b * (2 * S + 2 * kv_len) * Dp     # q,out,k,v double-buffered
    est += 2 * 4 * S * kv_len                             # mask
    est += 4 * block_b * S * kv_len                       # logits / probs
    if num_kv > 1:
        est += 4 * block_b * S * (2 * Dp + 2)             # flash scratch
    vmem_limit = int(min(max(2 * est, 16 * 1024 * 1024), 48 * 1024 * 1024))

    fn = pl.pallas_call(
        kernel,
        out_shape=jax.ShapeDtypeStruct((B, S, Dp), out_dtype),
        grid_spec=grid_spec,
        compiler_params=pltpu.CompilerParams(
            dimension_semantics=dim_sem,
            vmem_limit_bytes=vmem_limit,
        ),
    )

    def attention(k2, v2, q, mask):   # same argument order as Model.forward
        assert q.shape == (B, S, D) and k2.shape == (B, S, D) and v2.shape == (B, S, D)
        # The kernel pins the mask's batch block to 0, i.e. it assumes the
        # module's (1, S, S) batch-broadcast additive mask.
        assert mask.shape == (1, S, S), "kernel expects a (1, S, S) additive mask"
        if Dp != D:
            pad = ((0, 0), (0, 0), (0, Dp - D))
            q = jnp.pad(q, pad)
            k2 = jnp.pad(k2, pad)
            v2 = jnp.pad(v2, pad)
        out = fn(q, k2, v2, mask.astype(jnp.float32))
        return out[..., :D]

    return attention


def reference_attention(k2, v2, q, mask):
    d = q.shape[-1]
    hi = jax.lax.Precision.HIGHEST
    qk = jnp.einsum("bqd,bkd->bqk", q, k2, precision=hi) / math.sqrt(d)
    qk = qk + mask
    attn = jax.nn.softmax(qk, axis=-1)
    return jnp.einsum("bqk,bkd->bqd", attn, v2, precision=hi)


if __name__ == "__main__":
    # Shapes implied by the module: mask is (1, 56, 56) -> seq=56; small batch
    # and head_dim for the test.
    B, S, D = 2, 56, 32
    key = jax.random.PRNGKey(0)
    kq, kk, kv, km = jax.random.split(key, 4)

    q = jax.random.normal(kq, (B, S, D), dtype=jnp.float32)
    k2 = jax.random.normal(kk, (B, S, D), dtype=jnp.float32)
    v2 = jax.random.normal(kv, (B, S, D), dtype=jnp.float32)
    # Additive attention mask (broadcast over batch), analogue of the module mask.
    mask = jnp.where(
        jax.random.uniform(km, (1, S, S)) > 0.7, -1e9, 0.0
    ).astype(jnp.float32)

    attn = make_attention(B, S, D)
    out = jax.block_until_ready(attn(k2, v2, q, mask))

    ref = reference_attention(k2, v2, q, mask)
    assert out.shape == (B, S, D)
    err = float(jnp.max(jnp.abs(out - ref)))
    # f32 MXU operands + exact divide on this small-shape path -> tight match.
    assert jnp.allclose(out, ref, atol=1e-3, rtol=1e-3), f"max abs err {err}"

    print("KERNEL_OK")
</pallas_src>

<mosaic_0001>
module attributes {stable_mosaic.version = 11 : i64} {
  func.func @attn_kernel_fast(%arg0: i32, %arg1: memref<1x56x128xf32, #tpu.memory_space<vmem>>, %arg2: memref<1x56x128xf32, #tpu.memory_space<vmem>>, %arg3: memref<1x56x128xf32, #tpu.memory_space<vmem>>, %arg4: memref<1x56x56xf32, #tpu.memory_space<vmem>>, %arg5: memref<1x56x128xf32, #tpu.memory_space<vmem>>) attributes {dimension_semantics = [#tpu.dimension_semantics<parallel>], iteration_bounds = array<i64: 2>, scalar_prefetch = 0 : i64, scratch_operands = 0 : i64, tpu.core_type = #tpu.core_type<tc>, window_params = [{transform_indices = @transform_0, window_bounds = array<i64: 1, 56, 128>}, {transform_indices = @transform_1, window_bounds = array<i64: 1, 56, 128>}, {transform_indices = @transform_2, window_bounds = array<i64: 1, 56, 128>}, {pipeline_mode = #tpu.pipeline_mode<synchronous>, transform_indices = @transform_3, window_bounds = array<i64: 1, 56, 56>}, {transform_indices = @transform_4, window_bounds = array<i64: 1, 56, 128>}]} {
    %c0 = arith.constant 0 : index
    %c0_0 = arith.constant 0 : index
    %c0_1 = arith.constant 0 : index
    %0 = vector.load %arg1[%c0, %c0_0, %c0_1] : memref<1x56x128xf32, #tpu.memory_space<vmem>>, vector<1x56x128xf32>
    %cst = arith.constant 0.176776692 : f32
    %1 = vector.broadcast %cst : f32 to vector<1x56x128xf32>
    %2 = arith.mulf %0, %1 : vector<1x56x128xf32>
    %c0_2 = arith.constant 0 : index
    %c0_3 = arith.constant 0 : index
    %c0_4 = arith.constant 0 : index
    %3 = vector.load %arg2[%c0_2, %c0_3, %c0_4] : memref<1x56x128xf32, #tpu.memory_space<vmem>>, vector<1x56x128xf32>
    "tpu.trace_start"() <{level = 10 : i32, message = "bqd,bkd->bqk"}> : () -> ()
    %cst_5 = arith.constant dense<0.000000e+00> : vector<1x56x56xf32>
    %4 = tpu.matmul %2, %3, %cst_5 {dimension_numbers = #tpu.dot_dimension_numbers<[2], [2], [1], [1], [0, 0, 0, 1, 1, 1], [0], [0]>} : vector<1x56x128xf32>, vector<1x56x128xf32>, vector<1x56x56xf32> -> vector<1x56x56xf32>
    "tpu.trace_stop"() : () -> ()
    %c0_6 = arith.constant 0 : index
    %c0_7 = arith.constant 0 : index
    %c0_8 = arith.constant 0 : index
    %5 = vector.load %arg4[%c0_6, %c0_7, %c0_8] : memref<1x56x56xf32, #tpu.memory_space<vmem>>, vector<1x56x56xf32>
    %6 = arith.addf %4, %5 : vector<1x56x56xf32>
    %cst_9 = arith.constant dense<0xFF800000> : vector<1x56xf32>
    %7 = vector.multi_reduction <maximumf>, %6, %cst_9 [2] : vector<1x56x56xf32> to vector<1x56xf32>
    %8 = vector.shape_cast %7 : vector<1x56xf32> to vector<1x56x1xf32>
    %9 = vector.broadcast %8 : vector<1x56x1xf32> to vector<1x56x56xf32>
    %10 = arith.subf %6, %9 : vector<1x56x56xf32>
    %11 = math.exp %10 : vector<1x56x56xf32>
    %cst_10 = arith.constant dense<0.000000e+00> : vector<1x56xf32>
    %12 = vector.multi_reduction <add>, %11, %cst_10 [2] : vector<1x56x56xf32> to vector<1x56xf32>
    %13 = vector.shape_cast %12 : vector<1x56xf32> to vector<1x56x1xf32>
    %c0_11 = arith.constant 0 : index
    %c0_12 = arith.constant 0 : index
    %c0_13 = arith.constant 0 : index
    %14 = vector.load %arg3[%c0_11, %c0_12, %c0_13] : memref<1x56x128xf32, #tpu.memory_space<vmem>>, vector<1x56x128xf32>
    "tpu.trace_start"() <{level = 10 : i32, message = "bqk,bkd->bqd"}> : () -> ()
    %cst_14 = arith.constant dense<0.000000e+00> : vector<1x56x128xf32>
    %15 = tpu.matmul %11, %14, %cst_14 {dimension_numbers = #tpu.dot_dimension_numbers<[2], [1], [1], [2], [0, 0, 0, 1, 1, 2], [0], [0]>} : vector<1x56x56xf32>, vector<1x56x128xf32>, vector<1x56x128xf32> -> vector<1x56x128xf32>
    "tpu.trace_stop"() : () -> ()
    %cst_15 = arith.constant 1.000000e+00 : f32
    %16 = vector.broadcast %cst_15 : f32 to vector<1x56x1xf32>
    %17 = arith.divf %16, %13 : vector<1x56x1xf32>
    %18 = vector.broadcast %17 : vector<1x56x1xf32> to vector<1x56x128xf32>
    %19 = arith.mulf %15, %18 : vector<1x56x128xf32>
    %c0_16 = arith.constant 0 : index
    %c0_17 = arith.constant 0 : index
    %c0_18 = arith.constant 0 : index
    %20 = vector.load %arg5[%c0_16, %c0_17, %c0_18] : memref<1x56x128xf32, #tpu.memory_space<vmem>>, vector<1x56x128xf32>
    tpu.vector_store %arg5[%c0_16, %c0_17, %c0_18], %19 {strides = array<i32>} : memref<1x56x128xf32, #tpu.memory_space<vmem>>, vector<1x56x128xf32>,
    return
  }
  func.func @transform_0(%arg0: i32) -> (i32, i32, i32) {
    %c0_i32 = arith.constant 0 : i32
    %c0_i32_0 = arith.constant 0 : i32
    %c0_i32_1 = arith.constant 0 : i32
    return %arg0, %c0_i32, %c0_i32_0 : i32, i32, i32
  }
  func.func @transform_1(%arg0: i32) -> (i32, i32, i32) {
    %c0_i32 = arith.constant 0 : i32
    %c0_i32_0 = arith.constant 0 : i32
    %c0_i32_1 = arith.constant 0 : i32
    return %arg0, %c0_i32, %c0_i32_0 : i32, i32, i32
  }
  func.func @transform_2(%arg0: i32) -> (i32, i32, i32) {
    %c0_i32 = arith.constant 0 : i32
    %c0_i32_0 = arith.constant 0 : i32
    %c0_i32_1 = arith.constant 0 : i32
    return %arg0, %c0_i32, %c0_i32_0 : i32, i32, i32
  }
  func.func @transform_3(%arg0: i32) -> (i32, i32, i32) {
    %c0_i32 = arith.constant 0 : i32
    %c0_i32_0 = arith.constant 0 : i32
    %c0_i32_1 = arith.constant 0 : i32
    %c0_i32_2 = arith.constant 0 : i32
    return %c0_i32, %c0_i32_0, %c0_i32_1 : i32, i32, i32
  }
  func.func @transform_4(%arg0: i32) -> (i32, i32, i32) {
    %c0_i32 = arith.constant 0 : i32
    %c0_i32_0 = arith.constant 0 : i32
    %c0_i32_1 = arith.constant 0 : i32
    return %arg0, %c0_i32, %c0_i32_0 : i32, i32, i32
  }
}

</mosaic_0001>

<llo_original>
// kernel: tpu_custom_call.1
$region0: #{tpu_custom_call.1}
  #allocation0 [shape = 'u32[]', space=smem, size = 0x4, offset = 0x4, fixed_abs, tag = 'smem constant byte address 0x4 - core index']
  #allocation1 [shape = 'u32[144,128]{1,0:T(1,128)}', space=vmem, size = 0x12000, scoped, tag = 'internal scratch']
  %s0 = inlined_call_operand.hbm [shape: f32[2,56,128], index: 0, kind: input, shape index: {}]
  %s1 = inlined_call_operand.hbm [shape: f32[2,56,128], index: 1, kind: input, shape index: {}]
  %s2 = inlined_call_operand.hbm [shape: f32[2,56,128], index: 2, kind: input, shape index: {}]
  %s3 = inlined_call_operand.hbm [shape: f32[1,56,56], index: 3, kind: input, shape index: {}]
  %s4 = inlined_call_operand.hbm [shape: f32[2,56,128], index: 4, kind: output, shape index: {}]
  %s5 = sld [smem:[#allocation0]]
  $region65: #{tpu_custom_call.1} parent=0
    _
  %s7 = ssub.s32 1, %s5
  %s8 = scalar_select 0, %s7, %s5
  $region1: #{tpu_custom_call.1} parent=0
    #allocation2 [shape = 'u8[57344]{0}', space=vmem, size = 0xe000, scoped, tag = 'input window, operand 0']
    #allocation3 [shape = 's32[2]{0}', space=sflag, size = 0x8, scoped, tag = 'scoped memory for tpu_custom_call.1']
    #allocation4 [shape = 's32[2]{0}', space=sflag, size = 0x8, scoped, tag = 'scoped memory for tpu_custom_call.1']
    #allocation5 [shape = 'u8[57344]{0}', space=vmem, size = 0xe000, scoped, tag = 'input window, operand 1']
    #allocation6 [shape = 's32[2]{0}', space=sflag, size = 0x8, scoped, tag = 'scoped memory for tpu_custom_call.1']
    #allocation7 [shape = 'u8[57344]{0}', space=vmem, size = 0xe000, scoped, tag = 'input window, operand 2']
    #allocation8 [shape = 'u8[28672]{0}', space=vmem, size = 0x7000, scoped, tag = 'input window, operand 3, single buffered']
    #allocation9 [shape = 's32[1]{0}', space=sflag, size = 0x4, scoped, tag = 'scoped memory for tpu_custom_call.1']
    #allocation10 [shape = 'u8[57344]{0}', space=vmem, size = 0xe000, scoped, tag = 'output window, operand 0']
    %9 = vsyncpa [#allocation3], 0
    %s10 = scalar_lea.sflag [#allocation3], 1
    %11 = vsyncpa %s10, 0
    %12 = vsyncpa [#allocation6], 0
    %s13 = scalar_lea.sflag [#allocation6], 1
    %14 = vsyncpa %s13, 0
    %15 = vsyncpa [#allocation9], 0
    %16 = vsyncpa [#allocation4], 0
    %s17 = scalar_lea.sflag [#allocation4], 1
    %18 = vsyncpa %s17, 0
    loop: start=0, step=1, limit=4
    $region2: #{tpu_custom_call.1} parent=1 // loop_pre_header
      _
    $region3: #{tpu_custom_call.1} parent=1 // loop_header
      %s20 = sphi 0, %s24
      %p21 = scmp.ge.s32.totalorder %s20, 4
      %s30 = sphi 0, %s32
      %s33 = sphi 0, %s30
      %s34 = sphi 0, %s33
      %s50 = sphi 0, %s34
      %s56 = sphi 0, %s58
      %s59 = sphi 0, %s56
      %s60 = sphi 0, %s59
      %s76 = sphi 0, %s60
      %s82 = sphi 0, %s84
      %s85 = sphi 0, %s82
      %s86 = sphi 0, %s85
      %s102 = sphi 0, %s86
      %s106 = sphi 0, %s106
      %s108 = sphi 0, %s106
      %s109 = sphi 0, %s108
      %s123 = sphi 0, %s109
      %s129 = sphi 0, %s131
      %s132 = sphi 0, %s129
      %s133 = sphi 0, %s132
      %s149 = sphi 0, %s133
    $region4: #{tpu_custom_call.1} parent=1 // loop_header_branch
      %23 = sbr.rel (%p21) target = $region8
    $region5: #{tpu_custom_call.1} parent=1 // loop_body
      %s25 = ssub.s32 %s20, 1
      %s26 = ssub.s32 %s20, 2
      %s27 = sadd.s32 %s20, 1
      %s28 = ssub.s32 %s20, %s27
      %p29 = scmp.eq.s32.totalorder %s28, 0
      %s31 = sadd.s32 %s30, 1
      %s32 = scalar_select %p29, %s30, %s31
      %p35 = pneg %p29
      %p36 = scmp.eq.s32.totalorder %s20, 1
      %p37 = por %p35, %p36
      %p38 = scmp.ne.s32.totalorder %s30, %s33
      %p39 = scmp.eq.s32.totalorder %s20, 0
      %p40 = por %p38, %p39
      %p41 = scmp.ne.s32.totalorder %s30, %s33
      %p42 = scmp.eq.s32.totalorder %s25, 1
      %p43 = por %p41, %p42
      %p44 = scmp.ne.s32.totalorder %s33, %s34
      %p45 = scmp.eq.s32.totalorder %s25, 0
      %p46 = por %p44, %p45
      %p47 = scmp.ne.s32.totalorder %s33, %s34
      %p48 = scmp.eq.s32.totalorder %s26, 1
      %p49 = por %p47, %p48
      %p51 = scmp.ne.s32.totalorder %s34, %s50
      %p52 = scmp.eq.s32.totalorder %s26, 0
      %p53 = por %p51, %p52
      %s54 = ssub.s32 %s20, %s27
      %p55 = scmp.eq.s32.totalorder %s54, 0
      %s57 = sadd.s32 %s56, 1
      %s58 = scalar_select %p55, %s56, %s57
      %p61 = pneg %p55
      %p62 = scmp.eq.s32.totalorder %s20, 1
      %p63 = por %p61, %p62
      %p64 = scmp.ne.s32.totalorder %s56, %s59
      %p65 = scmp.eq.s32.totalorder %s20, 0
      %p66 = por %p64, %p65
      %p67 = scmp.ne.s32.totalorder %s56, %s59
      %p68 = scmp.eq.s32.totalorder %s25, 1
      %p69 = por %p67, %p68
      %p70 = scmp.ne.s32.totalorder %s59, %s60
      %p71 = scmp.eq.s32.totalorder %s25, 0
      %p72 = por %p70, %p71
      %p73 = scmp.ne.s32.totalorder %s59, %s60
      %p74 = scmp.eq.s32.totalorder %s26, 1
      %p75 = por %p73, %p74
      %p77 = scmp.ne.s32.totalorder %s60, %s76
      %p78 = scmp.eq.s32.totalorder %s26, 0
      %p79 = por %p77, %p78
      %s80 = ssub.s32 %s20, %s27
      %p81 = scmp.eq.s32.totalorder %s80, 0
      %s83 = sadd.s32 %s82, 1
      %s84 = scalar_select %p81, %s82, %s83
      %p87 = pneg %p81
      %p88 = scmp.eq.s32.totalorder %s20, 1
      %p89 = por %p87, %p88
      %p90 = scmp.ne.s32.totalorder %s82, %s85
      %p91 = scmp.eq.s32.totalorder %s20, 0
      %p92 = por %p90, %p91
      %p93 = scmp.ne.s32.totalorder %s82, %s85
      %p94 = scmp.eq.s32.totalorder %s25, 1
      %p95 = por %p93, %p94
      %p96 = scmp.ne.s32.totalorder %s85, %s86
      %p97 = scmp.eq.s32.totalorder %s25, 0
      %p98 = por %p96, %p97
      %p99 = scmp.ne.s32.totalorder %s85, %s86
      %p100 = scmp.eq.s32.totalorder %s26, 1
      %p101 = por %p99, %p100
      %p103 = scmp.ne.s32.totalorder %s86, %s102
      %p104 = scmp.eq.s32.totalorder %s26, 0
      %p105 = por %p103, %p104
      %s107 = sadd.s32 %s106, 1
      %p110 = scmp.eq.s32.totalorder %s20, 1
      %p111 = scmp.ne.s32.totalorder %s106, %s108
      %p112 = scmp.eq.s32.totalorder %s20, 0
      %p113 = por %p111, %p112
      %p114 = scmp.ne.s32.totalorder %s106, %s108
      %p115 = scmp.eq.s32.totalorder %s25, 1
      %p116 = por %p114, %p115
      %p117 = scmp.ne.s32.totalorder %s108, %s109
      %p118 = scmp.eq.s32.totalorder %s25, 0
      %p119 = por %p117, %p118
      %p120 = scmp.ne.s32.totalorder %s108, %s109
      %p121 = scmp.eq.s32.totalorder %s26, 1
      %p122 = por %p120, %p121
      %p124 = scmp.ne.s32.totalorder %s109, %s123
      %p125 = scmp.eq.s32.totalorder %s26, 0
      %p126 = por %p124, %p125
      %s127 = ssub.s32 %s20, %s27
      %p128 = scmp.eq.s32.totalorder %s127, 0
      %s130 = sadd.s32 %s129, 1
      %s131 = scalar_select %p128, %s129, %s130
      %p134 = pneg %p128
      %p135 = scmp.eq.s32.totalorder %s20, 1
      %p136 = por %p134, %p135
      %p137 = scmp.ne.s32.totalorder %s129, %s132
      %p138 = scmp.eq.s32.totalorder %s20, 0
      %p139 = por %p137, %p138
      %p140 = scmp.ne.s32.totalorder %s129, %s132
      %p141 = scmp.eq.s32.totalorder %s25, 1
      %p142 = por %p140, %p141
      %p143 = scmp.ne.s32.totalorder %s132, %s133
      %p144 = scmp.eq.s32.totalorder %s25, 0
      %p145 = por %p143, %p144
      %p146 = scmp.ne.s32.totalorder %s132, %s133
      %p147 = scmp.eq.s32.totalorder %s26, 1
      %p148 = por %p146, %p147
      %p150 = scmp.ne.s32.totalorder %s133, %s149
      %p151 = scmp.eq.s32.totalorder %s26, 0
      %p152 = por %p150, %p151
      %p153 = scmp.le.s32.totalorder 1, %s20
      %p154 = scmp.lt.s32.totalorder %s20, 3
      %p155 = pnand %p153, %p154
      %p156 = pneg %p155
      // Predicated region
      $region9: #{tpu_custom_call.1} parent=5 // pred_check
        _
      $region10: #{tpu_custom_call.1} parent=5 // pred_check_branch
        %158 = sbr.rel (%p155) target = $region12
      $region11: #{tpu_custom_call.1} parent=5 // pred_region
        %s159 = ssub.s32 %s20, 1
        // Predicated region
        $region13: #{tpu_custom_call.1} parent=11 // pred_check
          %p160 = pneg %p119
        $region14: #{tpu_custom_call.1} parent=11 // pred_check_branch
          %162 = sbr.rel (%p160) target = $region16
        $region15: #{tpu_custom_call.1} parent=11 // pred_region
          %s164 = ssub.s32 896, 896
          %165 = vsyncadd [#allocation9], %s164
          %s166 = sshll.u32 [#allocation8], 4
          %s167 = int_to_ptr.vmem [resolvable:$true] %s166
          %172 = dma.hbm_to_vmem [thread:$0]  %s3, 896, %s167, [#allocation9], 128, 128, 8
        $region16: #{tpu_custom_call.1} parent=11 // pred_fallthru
          _
      $region12: #{tpu_custom_call.1} parent=5 // pred_fallthru
        _
      %p173 = scmp.lt.s32.totalorder %s20, 2
      // Predicated region
      $region17: #{tpu_custom_call.1} parent=5 // pred_check
        %p174 = pneg %p173
      $region18: #{tpu_custom_call.1} parent=5 // pred_check_branch
        %176 = sbr.rel (%p174) target = $region20
      $region19: #{tpu_custom_call.1} parent=5 // pred_region
        // Predicated region
        $region21: #{tpu_custom_call.1} parent=19 // pred_check
          %p177 = pneg %p40
        $region22: #{tpu_custom_call.1} parent=19 // pred_check_branch
          %179 = sbr.rel (%p177) target = $region24
        $region23: #{tpu_custom_call.1} parent=19 // pred_region
          %s180 = sand.u32 %s30, 1
          %s181 = scalar_lea.sflag [#allocation3], %s180
          %s182 = sand.u32 %s30, 1
          %s183 = smul.addr %s182, 56
          %s184 = scalar_lea.vmem [#allocation2], %s183
          %s186 = ssub.s32 896, 896
          %187 = vsyncadd %s181, %s186
          %s188 = smul.addr %s20, 7
          %s189 = smul.addr %s188, 128
          %s190 = scalar_lea.hbm %s0, %s189
          %s191 = sshll.u32 %s184, 4
          %s192 = int_to_ptr.vmem [resolvable:$true] %s191
          %197 = dma.hbm_to_vmem [thread:$0]  %s190, 896, %s192, %s181, 128, 128, 8
        $region24: #{tpu_custom_call.1} parent=19 // pred_fallthru
          _
        // Predicated region
        $region25: #{tpu_custom_call.1} parent=19 // pred_check
          %p198 = pneg %p66
        $region26: #{tpu_custom_call.1} parent=19 // pred_check_branch
          %200 = sbr.rel (%p198) target = $region28
        $region27: #{tpu_custom_call.1} parent=19 // pred_region
          %s201 = sand.u32 %s20, 1
          %s202 = scalar_lea.sflag [#allocation6], %s201
          %s203 = sand.u32 %s56, 1
          %s204 = smul.addr %s203, 56
          %s205 = scalar_lea.vmem [#allocation5], %s204
          %s207 = ssub.s32 896, 896
          %208 = vsyncadd %s202, %s207
          %s209 = smul.addr %s20, 7
          %s210 = smul.addr %s209, 128
          %s211 = scalar_lea.hbm %s1, %s210
          %s212 = sshll.u32 %s205, 4
          %s213 = int_to_ptr.vmem [resolvable:$true] %s212
          %218 = dma.hbm_to_vmem [thread:$0]  %s211, 896, %s213, %s202, 128, 128, 8
        $region28: #{tpu_custom_call.1} parent=19 // pred_fallthru
          _
        // Predicated region
        $region29: #{tpu_custom_call.1} parent=19 // pred_check
          %p219 = pneg %p92
        $region30: #{tpu_custom_call.1} parent=19 // pred_check_branch
          %221 = sbr.rel (%p219) target = $region32
        $region31: #{tpu_custom_call.1} parent=19 // pred_region
          %s222 = sand.u32 %s20, 1
          %s223 = scalar_lea.sflag [#allocation6], %s222
          %s224 = sand.u32 %s82, 1
          %s225 = smul.addr %s224, 56
          %s226 = scalar_lea.vmem [#allocation7], %s225
          %s228 = ssub.s32 896, 896
          %229 = vsyncadd %s223, %s228
          %s230 = smul.addr %s20, 7
          %s231 = smul.addr %s230, 128
          %s232 = scalar_lea.hbm %s2, %s231
          %s233 = sshll.u32 %s226, 4
          %s234 = int_to_ptr.vmem [resolvable:$true] %s233
          %239 = dma.hbm_to_vmem [thread:$0]  %s232, 896, %s234, %s223, 128, 128, 8
        $region32: #{tpu_custom_call.1} parent=19 // pred_fallthru
          _
      $region20: #{tpu_custom_call.1} parent=5 // pred_fallthru
        _
      %p240 = scmp.le.s32.totalorder 1, %s20
      %p241 = scmp.lt.s32.totalorder %s20, 3
      %p242 = pnand %p240, %p241
      %p243 = pneg %p242
      // Predicated region
      $region33: #{tpu_custom_call.1} parent=5 // pred_check
        _
      $region34: #{tpu_custom_call.1} parent=5 // pred_check_branch
        %245 = sbr.rel (%p242) target = $region36
      $region35: #{tpu_custom_call.1} parent=5 // pred_region
        %s246 = ssub.s32 %s20, 1
        %s247 = sand.u32 %s33, 1
        %s248 = scalar_lea.sflag [#allocation3], %s247
        %s249 = sand.u32 %s33, 1
        %s250 = smul.addr %s249, 56
        %s251 = scalar_lea.vmem [#allocation2], %s250
        // Predicated region
        $region37: #{tpu_custom_call.1} parent=35 // pred_check
          %p252 = pneg %p46
        $region38: #{tpu_custom_call.1} parent=35 // pred_check_branch
          %254 = sbr.rel (%p252) target = $region40
        $region39: #{tpu_custom_call.1} parent=35 // pred_region
          %255 = dma.done %s248, 896
        $region40: #{tpu_custom_call.1} parent=35 // pred_fallthru
          _
        %s256 = sand.u32 %s25, 1
        %s257 = scalar_lea.sflag [#allocation6], %s256
        %s258 = sand.u32 %s59, 1
        %s259 = smul.addr %s258, 56
        %s260 = scalar_lea.vmem [#allocation5], %s259
        // Predicated region
        $region41: #{tpu_custom_call.1} parent=35 // pred_check
          %p261 = pneg %p72
        $region42: #{tpu_custom_call.1} parent=35 // pred_check_branch
          %263 = sbr.rel (%p261) target = $region44
        $region43: #{tpu_custom_call.1} parent=35 // pred_region
          %264 = dma.done %s257, 896
        $region44: #{tpu_custom_call.1} parent=35 // pred_fallthru
          _
        %s265 = sand.u32 %s25, 1
        %s266 = scalar_lea.sflag [#allocation6], %s265
        %s267 = sand.u32 %s85, 1
        %s268 = smul.addr %s267, 56
        %s269 = scalar_lea.vmem [#allocation7], %s268
        // Predicated region
        $region45: #{tpu_custom_call.1} parent=35 // pred_check
          %p270 = pneg %p98
        $region46: #{tpu_custom_call.1} parent=35 // pred_check_branch
          %272 = sbr.rel (%p270) target = $region48
        $region47: #{tpu_custom_call.1} parent=35 // pred_region
          %273 = dma.done %s266, 896
        $region48: #{tpu_custom_call.1} parent=35 // pred_fallthru
          _
        // Predicated region
        $region49: #{tpu_custom_call.1} parent=35 // pred_check
          %p274 = pneg %p119
        $region50: #{tpu_custom_call.1} parent=35 // pred_check_branch
          %276 = sbr.rel (%p274) target = $region52
        $region51: #{tpu_custom_call.1} parent=35 // pred_region
          %277 = dma.done [#allocation9], 896
        $region52: #{tpu_custom_call.1} parent=35 // pred_fallthru
          _
        %s278 = sand.u32 %s33, 1
        %s279 = scalar_lea.sflag [#allocation3], %s278
        %s280 = sand.u32 %s33, 1
        %s281 = smul.addr %s280, 56
        %s282 = scalar_lea.vmem [#allocation2], %s281
        %p283 = pneg %p46
        %p284 = pneg %p43
        %s285 = sand.u32 %s25, 1
        %s286 = scalar_lea.sflag [#allocation6], %s285
        %s287 = sand.u32 %s59, 1
        %s288 = smul.addr %s287, 56
        %s289 = scalar_lea.vmem [#allocation5], %s288
        %p290 = pneg %p72
        %p291 = pneg %p69
        %s292 = sand.u32 %s25, 1
        %s293 = scalar_lea.sflag [#allocation6], %s292
        %s294 = sand.u32 %s85, 1
        %s295 = smul.addr %s294, 56
        %s296 = scalar_lea.vmem [#allocation7], %s295
        %p297 = pneg %p98
        %p298 = pneg %p95
        %p299 = pneg %p119
        %p300 = pneg %p116
        %p301 = pneg %p145
        %p302 = pneg %p142
        %s303 = sand.u32 %s132, 1
        %s304 = scalar_lea.sflag [#allocation4], %s303
        %s305 = sand.u32 %s132, 1
        %s306 = smul.addr %s305, 56
        %s307 = scalar_lea.vmem [#allocation10], %s306
        %v308 = vld [vmem:[%s251] sm:$0xff]
        %v309 = vld [vmem:[%s251 + $0x8] sm:$0xff]
        %v310 = vld [vmem:[%s251 + $0x10] sm:$0xff]
        %v311 = vld [vmem:[%s251 + $0x18] sm:$0xff]
        %v312 = vld [vmem:[%s251 + $0x20] sm:$0xff]
        %v313 = vld [vmem:[%s251 + $0x28] sm:$0xff]
        %v314 = vld [vmem:[%s251 + $0x30] sm:$0xff]
        %v315 = vmul.f32 %v308, 0.17677669
        %v316 = vmul.f32 %v309, 0.17677669
        %v317 = vmul.f32 %v310, 0.17677669
        %v318 = vmul.f32 %v311, 0.17677669
        %v319 = vmul.f32 %v312, 0.17677669
        %v320 = vmul.f32 %v313, 0.17677669
        %v321 = vmul.f32 %v314, 0.17677669
        %v322 = vld [vmem:[%s260] sm:$0xff]
        %v323 = vld [vmem:[%s260 + $0x8] sm:$0xff]
        %v324 = vld [vmem:[%s260 + $0x10] sm:$0xff]
        %v325 = vld [vmem:[%s260 + $0x18] sm:$0xff]
        %v326 = vld [vmem:[%s260 + $0x20] sm:$0xff]
        %v327 = vld [vmem:[%s260 + $0x28] sm:$0xff]
        %v328 = vld [vmem:[%s260 + $0x30] sm:$0xff]
        %v329 = vld [vmem:[#allocation8] sm:$0xff]
        %v330 = vld [vmem:[#allocation8 + $0x8] sm:$0xff]
        %v331 = vld [vmem:[#allocation8 + $0x10] sm:$0xff]
        %v332 = vld [vmem:[#allocation8 + $0x18] sm:$0xff]
        %v333 = vld [vmem:[#allocation8 + $0x20] sm:$0xff]
        %v334 = vld [vmem:[#allocation8 + $0x28] sm:$0xff]
        %v335 = vld [vmem:[#allocation8 + $0x30] sm:$0xff]
        %336 = vmatprep.subr.mxu0 0.0
        %337 = vmatpush1.xpose.msra.mxu0 %v322
        %338 = vmatprep.subr.mxu0 0.0
        %339 = vmatpush1.xpose.msra.mxu0 %v323
        %340 = vmatprep.subr.mxu0 0.0
        %341 = vmatpush1.xpose.msra.mxu0 %v324
        %342 = vmatprep.subr.mxu0 0.0
        %343 = vmatpush1.xpose.msra.mxu0 %v325
        %344 = vmatprep.subr.mxu0 0.0
        %345 = vmatpush1.xpose.msra.mxu0 %v326
        %346 = vmatprep.subr.mxu0 0.0
        %347 = vmatpush1.xpose.msra.mxu0 %v327
        %348 = vmatprep.subr.mxu0 0.0
        %349 = vmatpush1.xpose.msra.mxu0 %v328
        %350 = vmatprep.subr.mxu0 0.0
        %351 = vmatpush1.xpose.msra.mxu0 0.0
        %352 = vmatprep.subr.mxu0 0.0
        %353 = vmatpush1.xpose.msra.mxu0 0.0
        %354 = vmatprep.subr.mxu0 0.0
        %355 = vmatpush1.xpose.msra.mxu0 0.0
        %356 = vmatprep.subr.mxu0 0.0
        %357 = vmatpush1.xpose.msra.mxu0 0.0
        %358 = vmatprep.subr.mxu0 0.0
        %359 = vmatpush1.xpose.msra.mxu0 0.0
        %360 = vmatprep.subr.mxu0 0.0
        %361 = vmatpush1.xpose.msra.mxu0 0.0
        %362 = vmatprep.subr.mxu0 0.0
        %363 = vmatpush1.xpose.msra.mxu0 0.0
        %364 = vmatprep.subr.mxu0 0.0
        %365 = vmatpush1.xpose.msra.mxu0 0.0
        %366 = vmatprep.subr.mxu0 0.0
        %367 = vmatpush1.xpose.msra.mxu0 0.0
        %368 = vmatprep.subr.mxu0 0.0
        %369 = vmatpush1.xpose.msra.mxu0 0.0
        %370 = vmatprep.subr.mxu0 0.0
        %371 = vmatpush1.xpose.msra.mxu0 0.0
        %372 = vmatprep.subr.mxu0 0.0
        %373 = vmatpush1.xpose.msra.mxu0 0.0
        %374 = vmatprep.subr.mxu0 0.0
        %375 = vmatpush1.xpose.msra.mxu0 0.0
        %376 = vmatprep.subr.mxu0 0.0
        %377 = vmatpush1.xpose.msra.mxu0 0.0
        %378 = vmatprep.subr.mxu0 0.0
        %379 = vmatpush1.xpose.msra.mxu0 0.0
        %380 = vmatprep.subr.mxu0 0.0
        %381 = vmatpush1.xpose.msra.mxu0 0.0
        %382 = vmatprep.subr.mxu0 0.0
        %383 = vmatpush1.xpose.msra.mxu0 0.0
        %384 = vmatprep.subr.mxu0 0.0
        %385 = vmatpush1.xpose.msra.mxu0 0.0
        %386 = vmatprep.subr.mxu0 0.0
        %387 = vmatpush1.xpose.msra.mxu0 0.0
        %388 = vmatprep.subr.mxu0 0.0
        %389 = vmatpush1.xpose.msra.mxu0 0.0
        %390 = vmatprep.subr.mxu0 0.0
        %391 = vmatpush1.xpose.msra.mxu0 0.0
        %392 = vmatprep.subr.mxu0 0.0
        %393 = vmatpush1.xpose.msra.mxu0 0.0
        %394 = vmatprep.subr.mxu0 0.0
        %395 = vmatpush1.xpose.msra.mxu0 0.0
        %396 = vmatprep.subr.mxu0 0.0
        %397 = vmatpush1.xpose.msra.mxu0 0.0
        %398 = vmatprep.subr.mxu0 0.0
        %399 = vmatpush1.xpose.msra.mxu0 0.0
        %400 = vmatprep.mubr.f32.mxu0 0.0
        %401 = vmatmul.mubr.f32.gmra.mrb[0].mxu0 %v315
        %v402 = vpop.f32.mrb[0].mxu0
        %v403 = vadd.f32 %v329, %v402
        %v404 = vpop.f32.mrb[0].mxu0
        %405 = vmatprep.mubr.f32.mxu0 0.0
        %406 = vmatmul.mubr.f32.gmra.mrb[0].mxu0 %v316
        %v407 = vpop.f32.mrb[0].mxu0
        %v408 = vadd.f32 %v330, %v407
        %v409 = vpop.f32.mrb[0].mxu0
        %410 = vmatprep.mubr.f32.mxu0 0.0
        %411 = vmatmul.mubr.f32.gmra.mrb[0].mxu0 %v317
        %v412 = vpop.f32.mrb[0].mxu0
        %v413 = vadd.f32 %v331, %v412
        %v414 = vpop.f32.mrb[0].mxu0
        %415 = vmatprep.mubr.f32.mxu0 0.0
        %416 = vmatmul.mubr.f32.gmra.mrb[0].mxu0 %v318
        %v417 = vpop.f32.mrb[0].mxu0
        %v418 = vadd.f32 %v332, %v417
        %v419 = vpop.f32.mrb[0].mxu0
        %420 = vmatprep.mubr.f32.mxu0 0.0
        %421 = vmatmul.mubr.f32.gmra.mrb[0].mxu0 %v319
        %v422 = vpop.f32.mrb[0].mxu0
        %v423 = vadd.f32 %v333, %v422
        %v424 = vpop.f32.mrb[0].mxu0
        %425 = vmatprep.mubr.f32.mxu0 0.0
        %426 = vmatmul.mubr.f32.gmra.mrb[0].mxu0 %v320
        %v427 = vpop.f32.mrb[0].mxu0
        %v428 = vadd.f32 %v334, %v427
        %v429 = vpop.f32.mrb[0].mxu0
        %430 = vmatprep.mubr.f32.mxu0 0.0
        %431 = vmatmul.mubr.f32.gmra.mrb[0].mxu0 %v321
        %v432 = vpop.f32.mrb[0].mxu0
        %v433 = vadd.f32 %v335, %v432
        %v434 = vpop.f32.mrb[0].mxu0
        %435 = vdwg.mxu0
        %vm436 = vcmask 457728
        %v437 = vsel %vm436, %v403, -inf
        %438 = vmax.xlane.f32.xlu0 %v437
        %v439 = vpop.xlane.xlu0 %438
        %v440 = vsel %vm436, %v408, -inf
        %441 = vmax.xlane.f32.xlu0 %v440
        %v442 = vpop.xlane.xlu0 %441
        %v443 = vsel %vm436, %v413, -inf
        %444 = vmax.xlane.f32.xlu0 %v443
        %v445 = vpop.xlane.xlu0 %444
        %v446 = vsel %vm436, %v418, -inf
        %447 = vmax.xlane.f32.xlu0 %v446
        %v448 = vpop.xlane.xlu0 %447
        %v449 = vsel %vm436, %v423, -inf
        %450 = vmax.xlane.f32.xlu0 %v449
        %v451 = vpop.xlane.xlu0 %450
        %v452 = vsel %vm436, %v428, -inf
        %453 = vmax.xlane.f32.xlu0 %v452
        %v454 = vpop.xlane.xlu0 %453
        %v455 = vsel %vm436, %v433, -inf
        %456 = vmax.xlane.f32.xlu0 %v455
        %v457 = vpop.xlane.xlu0 %456
        %v458 = vsub.f32 %v403, %v439
        %v459 = vsub.f32 %v408, %v442
        %v460 = vsub.f32 %v413, %v445
        %v461 = vsub.f32 %v418, %v448
        %v462 = vsub.f32 %v423, %v451
        %v463 = vsub.f32 %v428, %v454
        %v464 = vsub.f32 %v433, %v457
        %v465 = vmul.f32 %v458, 1.442695
        %v466 = vpow.pop %v465
        %v467 = vmul.f32 %v459, 1.442695
        %v468 = vpow.pop %v467
        %v469 = vmul.f32 %v460, 1.442695
        %v470 = vpow.pop %v469
        %v471 = vmul.f32 %v461, 1.442695
        %v472 = vpow.pop %v471
        %v473 = vmul.f32 %v462, 1.442695
        %v474 = vpow.pop %v473
        %v475 = vmul.f32 %v463, 1.442695
        %v476 = vpow.pop %v475
        %v477 = vmul.f32 %v464, 1.442695
        %v478 = vpow.pop %v477
        %v479 = vsel %vm436, %v466, 0.0
        %480 = vadd.xlane.f32.xlu0 %v479
        %v481 = vpop.xlane.xlu0 %480
        %v482 = vsel %vm436, %v468, 0.0
        %483 = vadd.xlane.f32.xlu0 %v482
        %v484 = vpop.xlane.xlu0 %483
        %v485 = vsel %vm436, %v470, 0.0
        %486 = vadd.xlane.f32.xlu0 %v485
        %v487 = vpop.xlane.xlu0 %486
        %v488 = vsel %vm436, %v472, 0.0
        %489 = vadd.xlane.f32.xlu0 %v488
        %v490 = vpop.xlane.xlu0 %489
        %v491 = vsel %vm436, %v474, 0.0
        %492 = vadd.xlane.f32.xlu0 %v491
        %v493 = vpop.xlane.xlu0 %492
        %v494 = vsel %vm436, %v476, 0.0
        %495 = vadd.xlane.f32.xlu0 %v494
        %v496 = vpop.xlane.xlu0 %495
        %v497 = vsel %vm436, %v478, 0.0
        %498 = vadd.xlane.f32.xlu0 %v497
        %v499 = vpop.xlane.xlu0 %498
        %v500 = vld [vmem:[%s269] sm:$0xff]
        %v501 = vld [vmem:[%s269 + $0x8] sm:$0xff]
        %v502 = vld [vmem:[%s269 + $0x10] sm:$0xff]
        %v503 = vld [vmem:[%s269 + $0x18] sm:$0xff]
        %v504 = vld [vmem:[%s269 + $0x20] sm:$0xff]
        %v505 = vld [vmem:[%s269 + $0x28] sm:$0xff]
        %v506 = vld [vmem:[%s269 + $0x30] sm:$0xff]
        %v508 = vsel %vm436, %v466, 0
        %v511 = vsel %vm436, %v468, 0
        %v514 = vsel %vm436, %v470, 0
        %v517 = vsel %vm436, %v472, 0
        %v520 = vsel %vm436, %v474, 0
        %v523 = vsel %vm436, %v476, 0
        %v526 = vsel %vm436, %v478, 0
        %528 = vmatprep.subr.mxu0 0.0
        %529 = vmatpush1.msra.mxu0 %v500
        %530 = vmatprep.subr.mxu0 0.0
        %531 = vmatpush1.msra.mxu0 %v501
        %532 = vmatprep.subr.mxu0 0.0
        %533 = vmatpush1.msra.mxu0 %v502
        %534 = vmatprep.subr.mxu0 0.0
        %535 = vmatpush1.msra.mxu0 %v503
        %536 = vmatprep.subr.mxu0 0.0
        %537 = vmatpush1.msra.mxu0 %v504
        %538 = vmatprep.subr.mxu0 0.0
        %539 = vmatpush1.msra.mxu0 %v505
        %540 = vmatprep.subr.mxu0 0.0
        %541 = vmatpush1.msra.mxu0 %v506
        %542 = vmatprep.subr.mxu0 0.0
        %543 = vmatpush1.msra.mxu0 0.0
        %544 = vmatprep.subr.mxu0 0.0
        %545 = vmatpush1.msra.mxu0 0.0
        %546 = vmatprep.subr.mxu0 0.0
        %547 = vmatpush1.msra.mxu0 0.0
        %548 = vmatprep.subr.mxu0 0.0
        %549 = vmatpush1.msra.mxu0 0.0
        %550 = vmatprep.subr.mxu0 0.0
        %551 = vmatpush1.msra.mxu0 0.0
        %552 = vmatprep.subr.mxu0 0.0
        %553 = vmatpush1.msra.mxu0 0.0
        %554 = vmatprep.subr.mxu0 0.0
        %555 = vmatpush1.msra.mxu0 0.0
        %556 = vmatprep.subr.mxu0 0.0
        %557 = vmatpush1.msra.mxu0 0.0
        %558 = vmatprep.subr.mxu0 0.0
        %559 = vmatpush1.msra.mxu0 0.0
        %560 = vmatprep.subr.mxu0 0.0
        %561 = vmatpush1.msra.mxu0 0.0
        %562 = vmatprep.subr.mxu0 0.0
        %563 = vmatpush1.msra.mxu0 0.0
        %564 = vmatprep.subr.mxu0 0.0
        %565 = vmatpush1.msra.mxu0 0.0
        %566 = vmatprep.subr.mxu0 0.0
        %567 = vmatpush1.msra.mxu0 0.0
        %568 = vmatprep.subr.mxu0 0.0
        %569 = vmatpush1.msra.mxu0 0.0
        %570 = vmatprep.subr.mxu0 0.0
        %571 = vmatpush1.msra.mxu0 0.0
        %572 = vmatprep.subr.mxu0 0.0
        %573 = vmatpush1.msra.mxu0 0.0
        %574 = vmatprep.subr.mxu0 0.0
        %575 = vmatpush1.msra.mxu0 0.0
        %576 = vmatprep.subr.mxu0 0.0
        %577 = vmatpush1.msra.mxu0 0.0
        %578 = vmatprep.subr.mxu0 0.0
        %579 = vmatpush1.msra.mxu0 0.0
        %580 = vmatprep.subr.mxu0 0.0
        %581 = vmatpush1.msra.mxu0 0.0
        %582 = vmatprep.subr.mxu0 0.0
        %583 = vmatpush1.msra.mxu0 0.0
        %584 = vmatprep.subr.mxu0 0.0
        %585 = vmatpush1.msra.mxu0 0.0
        %586 = vmatprep.subr.mxu0 0.0
        %587 = vmatpush1.msra.mxu0 0.0
        %588 = vmatprep.subr.mxu0 0.0
        %589 = vmatpush1.msra.mxu0 0.0
        %590 = vmatprep.subr.mxu0 0.0
        %591 = vmatpush1.msra.mxu0 0.0
        %592 = vmatprep.mubr.f32.mxu0 0.0
        %593 = vmatmul.mubr.f32.gmra.mrb[0].mxu0 %v508
        %v594 = vpop.f32.mrb[0].mxu0
        %v595 = vadd.f32 0.0, %v594
        %v596 = vpop.f32.mrb[0].mxu0
        %597 = vmatprep.mubr.f32.mxu0 0.0
        %598 = vmatmul.mubr.f32.gmra.mrb[0].mxu0 %v511
        %v599 = vpop.f32.mrb[0].mxu0
        %v600 = vadd.f32 0.0, %v599
        %v601 = vpop.f32.mrb[0].mxu0
        %602 = vmatprep.mubr.f32.mxu0 0.0
        %603 = vmatmul.mubr.f32.gmra.mrb[0].mxu0 %v514
        %v604 = vpop.f32.mrb[0].mxu0
        %v605 = vadd.f32 0.0, %v604
        %v606 = vpop.f32.mrb[0].mxu0
        %607 = vmatprep.mubr.f32.mxu0 0.0
        %608 = vmatmul.mubr.f32.gmra.mrb[0].mxu0 %v517
        %v609 = vpop.f32.mrb[0].mxu0
        %v610 = vadd.f32 0.0, %v609
        %v611 = vpop.f32.mrb[0].mxu0
        %612 = vmatprep.mubr.f32.mxu0 0.0
        %613 = vmatmul.mubr.f32.gmra.mrb[0].mxu0 %v520
        %v614 = vpop.f32.mrb[0].mxu0
        %v615 = vadd.f32 0.0, %v614
        %v616 = vpop.f32.mrb[0].mxu0
        %617 = vmatprep.mubr.f32.mxu0 0.0
        %618 = vmatmul.mubr.f32.gmra.mrb[0].mxu0 %v523
        %v619 = vpop.f32.mrb[0].mxu0
        %v620 = vadd.f32 0.0, %v619
        %v621 = vpop.f32.mrb[0].mxu0
        %622 = vmatprep.mubr.f32.mxu0 0.0
        %623 = vmatmul.mubr.f32.gmra.mrb[0].mxu0 %v526
        %v624 = vpop.f32.mrb[0].mxu0
        %v625 = vadd.f32 0.0, %v624
        %v626 = vpop.f32.mrb[0].mxu0
        %627 = vdwg.mxu0
        %v628 = vrcp.pop %v481
        %v629 = vmul.f32 1.0, %v628
        %v630 = vrcp.pop %v484
        %v631 = vmul.f32 1.0, %v630
        %v632 = vrcp.pop %v487
        %v633 = vmul.f32 1.0, %v632
        %v634 = vrcp.pop %v490
        %v635 = vmul.f32 1.0, %v634
        %v636 = vrcp.pop %v493
        %v637 = vmul.f32 1.0, %v636
        %v638 = vrcp.pop %v496
        %v639 = vmul.f32 1.0, %v638
        %v640 = vrcp.pop %v499
        %v641 = vmul.f32 1.0, %v640
        %v642 = vmul.f32 %v595, %v629
        %v643 = vmul.f32 %v600, %v631
        %v644 = vmul.f32 %v605, %v633
        %v645 = vmul.f32 %v610, %v635
        %v646 = vmul.f32 %v615, %v637
        %v647 = vmul.f32 %v620, %v639
        %v648 = vmul.f32 %v625, %v641
        %649 = vst [vmem:[%s307] sm:$0xff] %v642
        %650 = vst [vmem:[%s307 + $0x8] sm:$0xff] %v643
        %651 = vst [vmem:[%s307 + $0x10] sm:$0xff] %v644
        %652 = vst [vmem:[%s307 + $0x18] sm:$0xff] %v645
        %653 = vst [vmem:[%s307 + $0x20] sm:$0xff] %v646
        %654 = vst [vmem:[%s307 + $0x28] sm:$0xff] %v647
        %655 = vst [vmem:[%s307 + $0x30] sm:$0xff] %v648
        %s656 = sand.u32 %s132, 1
        %s657 = scalar_lea.sflag [#allocation4], %s656
        %s658 = sand.u32 %s132, 1
        %s659 = smul.addr %s658, 56
        %s660 = scalar_lea.vmem [#allocation10], %s659
        // Predicated region
        $region53: #{tpu_custom_call.1} parent=35 // pred_check
          %p661 = pneg %p142
        $region54: #{tpu_custom_call.1} parent=35 // pred_check_branch
          %663 = sbr.rel (%p661) target = $region56
        $region55: #{tpu_custom_call.1} parent=35 // pred_region
          %s665 = ssub.s32 896, 896
          %666 = vsyncadd %s657, %s665
          %s667 = smul.addr %s25, 7
          %s668 = smul.addr %s667, 128
          %s669 = scalar_lea.hbm %s4, %s668
          %s670 = sshll.u32 %s660, 4
          %s671 = int_to_ptr.vmem [resolvable:$true] %s670
          %676 = dma.vmem_to_hbm [thread:$0]  %s671, 896, %s669, %s657, 128, 128, 8
        $region56: #{tpu_custom_call.1} parent=35 // pred_fallthru
          _
      $region36: #{tpu_custom_call.1} parent=5 // pred_fallthru
        _
      %p677 = scmp.le.s32.totalorder 2, %s20
      // Predicated region
      $region57: #{tpu_custom_call.1} parent=5 // pred_check
        %p678 = pneg %p677
      $region58: #{tpu_custom_call.1} parent=5 // pred_check_branch
        %680 = sbr.rel (%p678) target = $region60
      $region59: #{tpu_custom_call.1} parent=5 // pred_region
        %s681 = ssub.s32 %s20, 2
        // Predicated region
        $region61: #{tpu_custom_call.1} parent=59 // pred_check
          %p682 = pneg %p148
        $region62: #{tpu_custom_call.1} parent=59 // pred_check_branch
          %684 = sbr.rel (%p682) target = $region64
        $region63: #{tpu_custom_call.1} parent=59 // pred_region
          %s685 = sand.u32 %s133, 1
          %s686 = scalar_lea.sflag [#allocation4], %s685
          %s687 = sand.u32 %s133, 1
          %s688 = smul.addr %s687, 56
          %s689 = scalar_lea.vmem [#allocation10], %s688
          %690 = dma.done %s686, 896
        $region64: #{tpu_custom_call.1} parent=59 // pred_fallthru
          _
      $region60: #{tpu_custom_call.1} parent=5 // pred_fallthru
        _
    $region6: #{tpu_custom_call.1} parent=1 // loop_footer
      %s24 = sadd.s32 1, %s20
    $region7: #{tpu_custom_call.1} parent=1 // loop_footer_branch
      %19 = sbr.rel target = $region3
    $region8: #{tpu_custom_call.1} parent=1 // loop_exit
      _
    %691 = vsyncpa [#allocation3], 1
    %s692 = scalar_lea.sflag [#allocation3], 1
    %693 = vsyncpa %s692, 1
    %694 = vsyncpa [#allocation6], 1
    %s695 = scalar_lea.sflag [#allocation6], 1
    %696 = vsyncpa %s695, 1
    %697 = vsyncpa [#allocation9], 1
    %698 = vsyncpa [#allocation4], 1
    %s699 = scalar_lea.sflag [#allocation4], 1
    %700 = vsyncpa %s699, 1

</llo_original>
